<compile_context>
chip_gen: v6e
topology: v6e:2x2x1
jax: 0.10.0
libtpu: 0.0.40
codegen_flags: <defaults>
</compile_context>

<pallas_src>
import jax
import jax.numpy as jnp
from jax.experimental import pallas as pl
from jax.experimental.pallas import tpu as pltpu

HIDDEN = 8


def mlp_kernel(params_ref, x_ref, o_ref):
    # params_ref: (32,) f32 in SMEM, layout [w1(8), b1(8), w2(8), b2(1), pad(7)]
    # x_ref / o_ref: (block_rows, lane) f32 in VMEM
    x = x_ref[...]
    acc = jnp.zeros_like(x)
    # Unrolled VPU FMAs over the 8 hidden units — no MXU, no scratch stores.
    for j in range(HIDDEN):
        w1j = params_ref[j]
        b1j = params_ref[HIDDEN + j]
        w2j = params_ref[2 * HIDDEN + j]
        acc = acc + w2j * jnp.maximum(x * w1j + b1j, 0.0)
    y = acc + params_ref[3 * HIDDEN]
    # sigmoid(y) = 1 / (1 + exp(-y)): exp and approx reciprocal both run on the EUP slot.
    o_ref[...] = pl.reciprocal(1.0 + jnp.exp(-y), approx=True).astype(o_ref.dtype)


def _round_up(n, m):
    return ((n + m - 1) // m) * m


def distance_classifier_forward(x, w1, b1, w2, b2, *, lane=512, block_rows=1024):
    """x: (B, 1) or (B,) f32.  w1: (8, 1), b1: (8,), w2: (1, 8), b2: (1,) (PyTorch Linear layout)."""
    orig_ndim = x.ndim
    B = x.shape[0]
    xf = x.reshape(-1).astype(jnp.float32)  # (B,)
    n = xf.shape[0]

    # Lane-dense slab: rows x lane, lane % 128 == 0, rows % 8 == 0, rows % block_rows == 0.
    rows = pl.cdiv(n, lane)
    rows = _round_up(max(rows, 1), 8)
    brows = min(block_rows, rows)          # both multiples of 8 -> brows multiple of 8
    rows = _round_up(rows, brows)
    n_pad = rows * lane

    xf = jnp.pad(xf, (0, n_pad - n))
    x2 = xf.reshape(rows, lane)

    # Pack the 25 parameters into one SMEM-resident scalar table (padded to 32 words).
    params = jnp.concatenate([
        w1.reshape(-1).astype(jnp.float32),   # 8  : w1[j]
        b1.reshape(-1).astype(jnp.float32),   # 8  : b1[j]
        w2.reshape(-1).astype(jnp.float32),   # 8  : w2[j]
        b2.reshape(-1).astype(jnp.float32),   # 1  : b2
        jnp.zeros((7,), jnp.float32),         # pad
    ])

    out2 = pl.pallas_call(
        mlp_kernel,
        out_shape=jax.ShapeDtypeStruct((rows, lane), jnp.float32),
        grid_spec=pltpu.PrefetchScalarGridSpec(
            num_scalar_prefetch=0,
            grid=(rows // brows,),
            in_specs=[
                pl.BlockSpec(memory_space=pltpu.MemorySpace.SMEM),   # packed params (scalars)
                pl.BlockSpec((brows, lane), lambda i: (i, 0)),       # x slab tile
            ],
            out_specs=pl.BlockSpec((brows, lane), lambda i: (i, 0)),
        ),
        compiler_params=pltpu.CompilerParams(
            dimension_semantics=("parallel",),   # shards tiles across v7x's 2 TensorCores
        ),
    )(params, x2)

    out = out2.reshape(-1)[:B]
    if orig_ndim == 2:
        return out.reshape(B, 1)
    return out


def reference_forward(x, w1, b1, w2, b2):
    h = jnp.maximum(x @ w1.T + b1, 0.0)
    return jax.nn.sigmoid(h @ w2.T + b2)


if __name__ == "__main__":
    key = jax.random.PRNGKey(0)
    k_x, k_w1, k_b1, k_w2, k_b2 = jax.random.split(key, 5)

    B = 16  # small batch, consistent with the module's (N, 1) input
    x = jax.random.normal(k_x, (B, 1), dtype=jnp.float32)
    w1 = jax.random.uniform(k_w1, (8, 1), minval=-1.0, maxval=1.0, dtype=jnp.float32)
    b1 = jax.random.uniform(k_b1, (8,), minval=-1.0, maxval=1.0, dtype=jnp.float32)
    w2 = jax.random.uniform(k_w2, (1, 8), minval=-1.0 / jnp.sqrt(8.0),
                            maxval=1.0 / jnp.sqrt(8.0), dtype=jnp.float32)
    b2 = jax.random.uniform(k_b2, (1,), minval=-1.0 / jnp.sqrt(8.0),
                            maxval=1.0 / jnp.sqrt(8.0), dtype=jnp.float32)

    out = distance_classifier_forward(x, w1, b1, w2, b2)
    out = jax.block_until_ready(out)

    ref = reference_forward(x, w1, b1, w2, b2)
    assert out.shape == (B, 1)
    # Tolerance loosened slightly vs 1e-5 because of the approximate EUP reciprocal in the sigmoid.
    assert jnp.allclose(out, ref, atol=2e-3, rtol=2e-3), (out, ref)

    print("KERNEL_OK")
</pallas_src>

<mosaic_0001>
module attributes {stable_mosaic.version = 11 : i64} {
  func.func @mlp_kernel(%arg0: i32, %arg1: memref<32xf32, #tpu.memory_space<smem>>, %arg2: memref<8x512xf32, #tpu.memory_space<vmem>>, %arg3: memref<8x512xf32, #tpu.memory_space<vmem>>) attributes {dimension_semantics = [#tpu.dimension_semantics<parallel>], iteration_bounds = array<i64: 1>, scalar_prefetch = 0 : i64, scratch_operands = 0 : i64, tpu.core_type = #tpu.core_type<tc>, window_params = [{transform_indices = @transform_0, window_bounds = array<i64: 32>}, {transform_indices = @transform_1, window_bounds = array<i64: 8, 512>}, {transform_indices = @transform_2, window_bounds = array<i64: 8, 512>}]} {
    %c0 = arith.constant 0 : index
    %c0_0 = arith.constant 0 : index
    %0 = vector.load %arg2[%c0, %c0_0] : memref<8x512xf32, #tpu.memory_space<vmem>>, vector<8x512xf32>
    %cst = arith.constant 0.000000e+00 : f32
    %1 = vector.broadcast %cst : f32 to vector<8x512xf32>
    %c0_1 = arith.constant 0 : index
    %2 = memref.load %arg1[%c0_1] : memref<32xf32, #tpu.memory_space<smem>>
    %c8 = arith.constant 8 : index
    %3 = memref.load %arg1[%c8] : memref<32xf32, #tpu.memory_space<smem>>
    %c16 = arith.constant 16 : index
    %4 = memref.load %arg1[%c16] : memref<32xf32, #tpu.memory_space<smem>>
    %5 = vector.broadcast %2 : f32 to vector<8x512xf32>
    %6 = arith.mulf %0, %5 : vector<8x512xf32>
    %7 = vector.broadcast %3 : f32 to vector<8x512xf32>
    %8 = arith.addf %6, %7 : vector<8x512xf32>
    %cst_2 = arith.constant 0.000000e+00 : f32
    %9 = vector.broadcast %cst_2 : f32 to vector<8x512xf32>
    %10 = arith.maximumf %8, %9 : vector<8x512xf32>
    %11 = vector.broadcast %4 : f32 to vector<8x512xf32>
    %12 = arith.mulf %11, %10 : vector<8x512xf32>
    %13 = arith.addf %1, %12 : vector<8x512xf32>
    %c1 = arith.constant 1 : index
    %14 = memref.load %arg1[%c1] : memref<32xf32, #tpu.memory_space<smem>>
    %c9 = arith.constant 9 : index
    %15 = memref.load %arg1[%c9] : memref<32xf32, #tpu.memory_space<smem>>
    %c17 = arith.constant 17 : index
    %16 = memref.load %arg1[%c17] : memref<32xf32, #tpu.memory_space<smem>>
    %17 = vector.broadcast %14 : f32 to vector<8x512xf32>
    %18 = arith.mulf %0, %17 : vector<8x512xf32>
    %19 = vector.broadcast %15 : f32 to vector<8x512xf32>
    %20 = arith.addf %18, %19 : vector<8x512xf32>
    %cst_3 = arith.constant 0.000000e+00 : f32
    %21 = vector.broadcast %cst_3 : f32 to vector<8x512xf32>
    %22 = arith.maximumf %20, %21 : vector<8x512xf32>
    %23 = vector.broadcast %16 : f32 to vector<8x512xf32>
    %24 = arith.mulf %23, %22 : vector<8x512xf32>
    %25 = arith.addf %13, %24 : vector<8x512xf32>
    %c2 = arith.constant 2 : index
    %26 = memref.load %arg1[%c2] : memref<32xf32, #tpu.memory_space<smem>>
    %c10 = arith.constant 10 : index
    %27 = memref.load %arg1[%c10] : memref<32xf32, #tpu.memory_space<smem>>
    %c18 = arith.constant 18 : index
    %28 = memref.load %arg1[%c18] : memref<32xf32, #tpu.memory_space<smem>>
    %29 = vector.broadcast %26 : f32 to vector<8x512xf32>
    %30 = arith.mulf %0, %29 : vector<8x512xf32>
    %31 = vector.broadcast %27 : f32 to vector<8x512xf32>
    %32 = arith.addf %30, %31 : vector<8x512xf32>
    %cst_4 = arith.constant 0.000000e+00 : f32
    %33 = vector.broadcast %cst_4 : f32 to vector<8x512xf32>
    %34 = arith.maximumf %32, %33 : vector<8x512xf32>
    %35 = vector.broadcast %28 : f32 to vector<8x512xf32>
    %36 = arith.mulf %35, %34 : vector<8x512xf32>
    %37 = arith.addf %25, %36 : vector<8x512xf32>
    %c3 = arith.constant 3 : index
    %38 = memref.load %arg1[%c3] : memref<32xf32, #tpu.memory_space<smem>>
    %c11 = arith.constant 11 : index
    %39 = memref.load %arg1[%c11] : memref<32xf32, #tpu.memory_space<smem>>
    %c19 = arith.constant 19 : index
    %40 = memref.load %arg1[%c19] : memref<32xf32, #tpu.memory_space<smem>>
    %41 = vector.broadcast %38 : f32 to vector<8x512xf32>
    %42 = arith.mulf %0, %41 : vector<8x512xf32>
    %43 = vector.broadcast %39 : f32 to vector<8x512xf32>
    %44 = arith.addf %42, %43 : vector<8x512xf32>
    %cst_5 = arith.constant 0.000000e+00 : f32
    %45 = vector.broadcast %cst_5 : f32 to vector<8x512xf32>
    %46 = arith.maximumf %44, %45 : vector<8x512xf32>
    %47 = vector.broadcast %40 : f32 to vector<8x512xf32>
    %48 = arith.mulf %47, %46 : vector<8x512xf32>
    %49 = arith.addf %37, %48 : vector<8x512xf32>
    %c4 = arith.constant 4 : index
    %50 = memref.load %arg1[%c4] : memref<32xf32, #tpu.memory_space<smem>>
    %c12 = arith.constant 12 : index
    %51 = memref.load %arg1[%c12] : memref<32xf32, #tpu.memory_space<smem>>
    %c20 = arith.constant 20 : index
    %52 = memref.load %arg1[%c20] : memref<32xf32, #tpu.memory_space<smem>>
    %53 = vector.broadcast %50 : f32 to vector<8x512xf32>
    %54 = arith.mulf %0, %53 : vector<8x512xf32>
    %55 = vector.broadcast %51 : f32 to vector<8x512xf32>
    %56 = arith.addf %54, %55 : vector<8x512xf32>
    %cst_6 = arith.constant 0.000000e+00 : f32
    %57 = vector.broadcast %cst_6 : f32 to vector<8x512xf32>
    %58 = arith.maximumf %56, %57 : vector<8x512xf32>
    %59 = vector.broadcast %52 : f32 to vector<8x512xf32>
    %60 = arith.mulf %59, %58 : vector<8x512xf32>
    %61 = arith.addf %49, %60 : vector<8x512xf32>
    %c5 = arith.constant 5 : index
    %62 = memref.load %arg1[%c5] : memref<32xf32, #tpu.memory_space<smem>>
    %c13 = arith.constant 13 : index
    %63 = memref.load %arg1[%c13] : memref<32xf32, #tpu.memory_space<smem>>
    %c21 = arith.constant 21 : index
    %64 = memref.load %arg1[%c21] : memref<32xf32, #tpu.memory_space<smem>>
    %65 = vector.broadcast %62 : f32 to vector<8x512xf32>
    %66 = arith.mulf %0, %65 : vector<8x512xf32>
    %67 = vector.broadcast %63 : f32 to vector<8x512xf32>
    %68 = arith.addf %66, %67 : vector<8x512xf32>
    %cst_7 = arith.constant 0.000000e+00 : f32
    %69 = vector.broadcast %cst_7 : f32 to vector<8x512xf32>
    %70 = arith.maximumf %68, %69 : vector<8x512xf32>
    %71 = vector.broadcast %64 : f32 to vector<8x512xf32>
    %72 = arith.mulf %71, %70 : vector<8x512xf32>
    %73 = arith.addf %61, %72 : vector<8x512xf32>
    %c6 = arith.constant 6 : index
    %74 = memref.load %arg1[%c6] : memref<32xf32, #tpu.memory_space<smem>>
    %c14 = arith.constant 14 : index
    %75 = memref.load %arg1[%c14] : memref<32xf32, #tpu.memory_space<smem>>
    %c22 = arith.constant 22 : index
    %76 = memref.load %arg1[%c22] : memref<32xf32, #tpu.memory_space<smem>>
    %77 = vector.broadcast %74 : f32 to vector<8x512xf32>
    %78 = arith.mulf %0, %77 : vector<8x512xf32>
    %79 = vector.broadcast %75 : f32 to vector<8x512xf32>
    %80 = arith.addf %78, %79 : vector<8x512xf32>
    %cst_8 = arith.constant 0.000000e+00 : f32
    %81 = vector.broadcast %cst_8 : f32 to vector<8x512xf32>
    %82 = arith.maximumf %80, %81 : vector<8x512xf32>
    %83 = vector.broadcast %76 : f32 to vector<8x512xf32>
    %84 = arith.mulf %83, %82 : vector<8x512xf32>
    %85 = arith.addf %73, %84 : vector<8x512xf32>
    %c7 = arith.constant 7 : index
    %86 = memref.load %arg1[%c7] : memref<32xf32, #tpu.memory_space<smem>>
    %c15 = arith.constant 15 : index
    %87 = memref.load %arg1[%c15] : memref<32xf32, #tpu.memory_space<smem>>
    %c23 = arith.constant 23 : index
    %88 = memref.load %arg1[%c23] : memref<32xf32, #tpu.memory_space<smem>>
    %89 = vector.broadcast %86 : f32 to vector<8x512xf32>
    %90 = arith.mulf %0, %89 : vector<8x512xf32>
    %91 = vector.broadcast %87 : f32 to vector<8x512xf32>
    %92 = arith.addf %90, %91 : vector<8x512xf32>
    %cst_9 = arith.constant 0.000000e+00 : f32
    %93 = vector.broadcast %cst_9 : f32 to vector<8x512xf32>
    %94 = arith.maximumf %92, %93 : vector<8x512xf32>
    %95 = vector.broadcast %88 : f32 to vector<8x512xf32>
    %96 = arith.mulf %95, %94 : vector<8x512xf32>
    %97 = arith.addf %85, %96 : vector<8x512xf32>
    %c24 = arith.constant 24 : index
    %98 = memref.load %arg1[%c24] : memref<32xf32, #tpu.memory_space<smem>>
    %99 = vector.broadcast %98 : f32 to vector<8x512xf32>
    %100 = arith.addf %97, %99 : vector<8x512xf32>
    %cst_10 = arith.constant 0.000000e+00 : f32
    %101 = vector.broadcast %cst_10 : f32 to vector<8x512xf32>
    %102 = arith.subf %101, %100 : vector<8x512xf32>
    %103 = math.exp %102 : vector<8x512xf32>
    %cst_11 = arith.constant 1.000000e+00 : f32
    %104 = vector.broadcast %cst_11 : f32 to vector<8x512xf32>
    %105 = arith.addf %104, %103 : vector<8x512xf32>
    %106 = tpu.reciprocal %105 {approx = true} : vector<8x512xf32> -> vector<8x512xf32>
    %c0_12 = arith.constant 0 : index
    %c0_13 = arith.constant 0 : index
    %107 = vector.load %arg3[%c0_12, %c0_13] : memref<8x512xf32, #tpu.memory_space<vmem>>, vector<8x512xf32>
    tpu.vector_store %arg3[%c0_12, %c0_13], %106 {strides = array<i32>} : memref<8x512xf32, #tpu.memory_space<vmem>>, vector<8x512xf32>,
    return
  }
  func.func @transform_0(%arg0: i32) -> i32 {
    %c0_i32 = arith.constant 0 : i32
    %c0_i32_0 = arith.constant 0 : i32
    return %c0_i32 : i32
  }
  func.func @transform_1(%arg0: i32) -> (i32, i32) {
    %c0_i32 = arith.constant 0 : i32
    %c0_i32_0 = arith.constant 0 : i32
    return %arg0, %c0_i32 : i32, i32
  }
  func.func @transform_2(%arg0: i32) -> (i32, i32) {
    %c0_i32 = arith.constant 0 : i32
    %c0_i32_0 = arith.constant 0 : i32
    return %arg0, %c0_i32 : i32, i32
  }
}

</mosaic_0001>

<llo_original>
// kernel: tpu_custom_call.1
$region0: #{tpu_custom_call.1}
  #allocation0 [shape = 'u32[]', space=smem, size = 0x4, offset = 0x4, fixed_abs, tag = 'smem constant byte address 0x4 - core index']
  #allocation1 [shape = 'u32[144,128]{1,0:T(1,128)}', space=vmem, size = 0x12000, scoped, tag = 'internal scratch']
  %s0 = inlined_call_operand.hbm [shape: f32[32], index: 0, kind: input, shape index: {}]
  %s1 = inlined_call_operand.hbm [shape: f32[8,512], index: 1, kind: input, shape index: {}]
  %s2 = inlined_call_operand.hbm [shape: f32[8,512], index: 2, kind: output, shape index: {}]
  %s3 = sld [smem:[#allocation0]]
  $region26: #{tpu_custom_call.1} parent=0
    _
  %s5 = ssub.s32 1, %s3
  %s6 = scalar_select 0, %s5, %s3
  $region1: #{tpu_custom_call.1} parent=0
    #allocation2 [shape = 'u8[512]{0}', space=smem, size = 0x200, scoped, tag = 'input window, operand 0, single buffered']
    #allocation3 [shape = 's32[1]{0}', space=sflag, size = 0x4, scoped, tag = 'scoped memory for tpu_custom_call.1']
    #allocation4 [shape = 's32[1]{0}', space=sflag, size = 0x4, scoped, tag = 'scoped memory for tpu_custom_call.1']
    #allocation5 [shape = 's32[1]{0}', space=sflag, size = 0x4, scoped, tag = 'scoped memory for tpu_custom_call.1']
    #allocation6 [shape = 'u8[16384]{0}', space=vmem, size = 0x4000, scoped, tag = 'input window, operand 1, single buffered']
    #allocation7 [shape = 'u8[16384]{0}', space=vmem, size = 0x4000, scoped, tag = 'output window, operand 0, single buffered']
    %7 = vsyncpa [#allocation5], 0
    %8 = vsyncpa [#allocation3], 0
    %9 = vsyncpa [#allocation4], 0
    // Predicated region
    $region2: #{tpu_custom_call.1} parent=1 // pred_check
      _
    $region3: #{tpu_custom_call.1} parent=1 // pred_check_branch
      %11 = sbr.rel (0) target = $region5
    $region4: #{tpu_custom_call.1} parent=1 // pred_region
      %s13 = ssub.s32 16, 16
      %14 = vsyncadd [#allocation5], %s13
      %17 = dma.hbm_to_smem %s0, 16, [#allocation2], [#allocation5]
    $region5: #{tpu_custom_call.1} parent=1 // pred_fallthru
      _
    // Predicated region
    $region6: #{tpu_custom_call.1} parent=1 // pred_check
      _
    $region7: #{tpu_custom_call.1} parent=1 // pred_check_branch
      %19 = sbr.rel (0) target = $region9
    $region8: #{tpu_custom_call.1} parent=1 // pred_region
      %s21 = ssub.s32 512, 512
      %22 = vsyncadd [#allocation3], %s21
      %s24 = sshll.u32 [#allocation6], 4
      %s25 = int_to_ptr.vmem [resolvable:$true] %s24
      %27 = dma.hbm_to_vmem [thread:$0]  %s1, 512, %s25, [#allocation3]
    $region9: #{tpu_custom_call.1} parent=1 // pred_fallthru
      _
    // Predicated region
    $region10: #{tpu_custom_call.1} parent=1 // pred_check
      _
    $region11: #{tpu_custom_call.1} parent=1 // pred_check_branch
      %29 = sbr.rel (0) target = $region13
    $region12: #{tpu_custom_call.1} parent=1 // pred_region
      %30 = dma.done [#allocation5], 16
    $region13: #{tpu_custom_call.1} parent=1 // pred_fallthru
      _
    // Predicated region
    $region14: #{tpu_custom_call.1} parent=1 // pred_check
      _
    $region15: #{tpu_custom_call.1} parent=1 // pred_check_branch
      %32 = sbr.rel (0) target = $region17
    $region16: #{tpu_custom_call.1} parent=1 // pred_region
      %33 = dma.done [#allocation3], 512
    $region17: #{tpu_custom_call.1} parent=1 // pred_fallthru
      _
    %34 = sfence
    %v35 = vld [vmem:[#allocation6] sm:$0xff]
    %v36 = vld [vmem:[#allocation6 + $0x8] sm:$0xff]
    %v37 = vld [vmem:[#allocation6 + $0x10] sm:$0xff]
    %v38 = vld [vmem:[#allocation6 + $0x18] sm:$0xff]
    %s39 = sld [smem:[#allocation2]]
    %s40 = sld [smem:[#allocation2 + $0x8]]
    %s41 = sld [smem:[#allocation2 + $0x10]]
    %v42 = vstv %s39
    %v43 = vmul.f32 %v35, %v42
    %v44 = vmul.f32 %v36, %v42
    %v45 = vmul.f32 %v37, %v42
    %v46 = vmul.f32 %v38, %v42
    %v47 = vstv %s40
    %v48 = vadd.f32 %v43, %v47
    %v49 = vadd.f32 %v44, %v47
    %v50 = vadd.f32 %v45, %v47
    %v51 = vadd.f32 %v46, %v47
    %v52 = vmax.f32 %v48, 0.0
    %v53 = vmax.f32 %v49, 0.0
    %v54 = vmax.f32 %v50, 0.0
    %v55 = vmax.f32 %v51, 0.0
    %v56 = vstv %s41
    %v57 = vmul.f32 %v56, %v52
    %v58 = vmul.f32 %v56, %v53
    %v59 = vmul.f32 %v56, %v54
    %v60 = vmul.f32 %v56, %v55
    %v61 = vadd.f32 %v57, 0.0
    %v62 = vadd.f32 %v58, 0.0
    %v63 = vadd.f32 %v59, 0.0
    %v64 = vadd.f32 %v60, 0.0
    %s65 = sld [smem:[#allocation2 + $0x1]]
    %s66 = sld [smem:[#allocation2 + $0x9]]
    %s67 = sld [smem:[#allocation2 + $0x11]]
    %v68 = vstv %s65
    %v69 = vmul.f32 %v35, %v68
    %v70 = vmul.f32 %v36, %v68
    %v71 = vmul.f32 %v37, %v68
    %v72 = vmul.f32 %v38, %v68
    %v73 = vstv %s66
    %v74 = vadd.f32 %v69, %v73
    %v75 = vadd.f32 %v70, %v73
    %v76 = vadd.f32 %v71, %v73
    %v77 = vadd.f32 %v72, %v73
    %v78 = vmax.f32 %v74, 0.0
    %v79 = vmax.f32 %v75, 0.0
    %v80 = vmax.f32 %v76, 0.0
    %v81 = vmax.f32 %v77, 0.0
    %v82 = vstv %s67
    %v83 = vmul.f32 %v82, %v78
    %v84 = vmul.f32 %v82, %v79
    %v85 = vmul.f32 %v82, %v80
    %v86 = vmul.f32 %v82, %v81
    %v87 = vadd.f32 %v61, %v83
    %v88 = vadd.f32 %v62, %v84
    %v89 = vadd.f32 %v63, %v85
    %v90 = vadd.f32 %v64, %v86
    %s91 = sld [smem:[#allocation2 + $0x2]]
    %s92 = sld [smem:[#allocation2 + $0xa]]
    %s93 = sld [smem:[#allocation2 + $0x12]]
    %v94 = vstv %s91
    %v95 = vmul.f32 %v35, %v94
    %v96 = vmul.f32 %v36, %v94
    %v97 = vmul.f32 %v37, %v94
    %v98 = vmul.f32 %v38, %v94
    %v99 = vstv %s92
    %v100 = vadd.f32 %v95, %v99
    %v101 = vadd.f32 %v96, %v99
    %v102 = vadd.f32 %v97, %v99
    %v103 = vadd.f32 %v98, %v99
    %v104 = vmax.f32 %v100, 0.0
    %v105 = vmax.f32 %v101, 0.0
    %v106 = vmax.f32 %v102, 0.0
    %v107 = vmax.f32 %v103, 0.0
    %v108 = vstv %s93
    %v109 = vmul.f32 %v108, %v104
    %v110 = vmul.f32 %v108, %v105
    %v111 = vmul.f32 %v108, %v106
    %v112 = vmul.f32 %v108, %v107
    %v113 = vadd.f32 %v87, %v109
    %v114 = vadd.f32 %v88, %v110
    %v115 = vadd.f32 %v89, %v111
    %v116 = vadd.f32 %v90, %v112
    %s117 = sld [smem:[#allocation2 + $0x3]]
    %s118 = sld [smem:[#allocation2 + $0xb]]
    %s119 = sld [smem:[#allocation2 + $0x13]]
    %v120 = vstv %s117
    %v121 = vmul.f32 %v35, %v120
    %v122 = vmul.f32 %v36, %v120
    %v123 = vmul.f32 %v37, %v120
    %v124 = vmul.f32 %v38, %v120
    %v125 = vstv %s118
    %v126 = vadd.f32 %v121, %v125
    %v127 = vadd.f32 %v122, %v125
    %v128 = vadd.f32 %v123, %v125
    %v129 = vadd.f32 %v124, %v125
    %v130 = vmax.f32 %v126, 0.0
    %v131 = vmax.f32 %v127, 0.0
    %v132 = vmax.f32 %v128, 0.0
    %v133 = vmax.f32 %v129, 0.0
    %v134 = vstv %s119
    %v135 = vmul.f32 %v134, %v130
    %v136 = vmul.f32 %v134, %v131
    %v137 = vmul.f32 %v134, %v132
    %v138 = vmul.f32 %v134, %v133
    %v139 = vadd.f32 %v113, %v135
    %v140 = vadd.f32 %v114, %v136
    %v141 = vadd.f32 %v115, %v137
    %v142 = vadd.f32 %v116, %v138
    %s143 = sld [smem:[#allocation2 + $0x4]]
    %s144 = sld [smem:[#allocation2 + $0xc]]
    %s145 = sld [smem:[#allocation2 + $0x14]]
    %v146 = vstv %s143
    %v147 = vmul.f32 %v35, %v146
    %v148 = vmul.f32 %v36, %v146
    %v149 = vmul.f32 %v37, %v146
    %v150 = vmul.f32 %v38, %v146
    %v151 = vstv %s144
    %v152 = vadd.f32 %v147, %v151
    %v153 = vadd.f32 %v148, %v151
    %v154 = vadd.f32 %v149, %v151
    %v155 = vadd.f32 %v150, %v151
    %v156 = vmax.f32 %v152, 0.0
    %v157 = vmax.f32 %v153, 0.0
    %v158 = vmax.f32 %v154, 0.0
    %v159 = vmax.f32 %v155, 0.0
    %v160 = vstv %s145
    %v161 = vmul.f32 %v160, %v156
    %v162 = vmul.f32 %v160, %v157
    %v163 = vmul.f32 %v160, %v158
    %v164 = vmul.f32 %v160, %v159
    %v165 = vadd.f32 %v139, %v161
    %v166 = vadd.f32 %v140, %v162
    %v167 = vadd.f32 %v141, %v163
    %v168 = vadd.f32 %v142, %v164
    %s169 = sld [smem:[#allocation2 + $0x5]]
    %s170 = sld [smem:[#allocation2 + $0xd]]
    %s171 = sld [smem:[#allocation2 + $0x15]]
    %v172 = vstv %s169
    %v173 = vmul.f32 %v35, %v172
    %v174 = vmul.f32 %v36, %v172
    %v175 = vmul.f32 %v37, %v172
    %v176 = vmul.f32 %v38, %v172
    %v177 = vstv %s170
    %v178 = vadd.f32 %v173, %v177
    %v179 = vadd.f32 %v174, %v177
    %v180 = vadd.f32 %v175, %v177
    %v181 = vadd.f32 %v176, %v177
    %v182 = vmax.f32 %v178, 0.0
    %v183 = vmax.f32 %v179, 0.0
    %v184 = vmax.f32 %v180, 0.0
    %v185 = vmax.f32 %v181, 0.0
    %v186 = vstv %s171
    %v187 = vmul.f32 %v186, %v182
    %v188 = vmul.f32 %v186, %v183
    %v189 = vmul.f32 %v186, %v184
    %v190 = vmul.f32 %v186, %v185
    %v191 = vadd.f32 %v165, %v187
    %v192 = vadd.f32 %v166, %v188
    %v193 = vadd.f32 %v167, %v189
    %v194 = vadd.f32 %v168, %v190
    %s195 = sld [smem:[#allocation2 + $0x6]]
    %s196 = sld [smem:[#allocation2 + $0xe]]
    %s197 = sld [smem:[#allocation2 + $0x16]]
    %v198 = vstv %s195
    %v199 = vmul.f32 %v35, %v198
    %v200 = vmul.f32 %v36, %v198
    %v201 = vmul.f32 %v37, %v198
    %v202 = vmul.f32 %v38, %v198
    %v203 = vstv %s196
    %v204 = vadd.f32 %v199, %v203
    %v205 = vadd.f32 %v200, %v203
    %v206 = vadd.f32 %v201, %v203
    %v207 = vadd.f32 %v202, %v203
    %v208 = vmax.f32 %v204, 0.0
    %v209 = vmax.f32 %v205, 0.0
    %v210 = vmax.f32 %v206, 0.0
    %v211 = vmax.f32 %v207, 0.0
    %v212 = vstv %s197
    %v213 = vmul.f32 %v212, %v208
    %v214 = vmul.f32 %v212, %v209
    %v215 = vmul.f32 %v212, %v210
    %v216 = vmul.f32 %v212, %v211
    %v217 = vadd.f32 %v191, %v213
    %v218 = vadd.f32 %v192, %v214
    %v219 = vadd.f32 %v193, %v215
    %v220 = vadd.f32 %v194, %v216
    %s221 = sld [smem:[#allocation2 + $0x7]]
    %s222 = sld [smem:[#allocation2 + $0xf]]
    %s223 = sld [smem:[#allocation2 + $0x17]]
    %v224 = vstv %s221
    %v225 = vmul.f32 %v35, %v224
    %v226 = vmul.f32 %v36, %v224
    %v227 = vmul.f32 %v37, %v224
    %v228 = vmul.f32 %v38, %v224
    %v229 = vstv %s222
    %v230 = vadd.f32 %v225, %v229
    %v231 = vadd.f32 %v226, %v229
    %v232 = vadd.f32 %v227, %v229
    %v233 = vadd.f32 %v228, %v229
    %v234 = vmax.f32 %v230, 0.0
    %v235 = vmax.f32 %v231, 0.0
    %v236 = vmax.f32 %v232, 0.0
    %v237 = vmax.f32 %v233, 0.0
    %v238 = vstv %s223
    %v239 = vmul.f32 %v238, %v234
    %v240 = vmul.f32 %v238, %v235
    %v241 = vmul.f32 %v238, %v236
    %v242 = vmul.f32 %v238, %v237
    %v243 = vadd.f32 %v217, %v239
    %v244 = vadd.f32 %v218, %v240
    %v245 = vadd.f32 %v219, %v241
    %v246 = vadd.f32 %v220, %v242
    %s247 = sld [smem:[#allocation2 + $0x18]]
    %v248 = vstv %s247
    %v249 = vadd.f32 %v243, %v248
    %v250 = vadd.f32 %v244, %v248
    %v251 = vadd.f32 %v245, %v248
    %v252 = vadd.f32 %v246, %v248
    %v253 = vsub.f32 0.0, %v249
    %v254 = vsub.f32 0.0, %v250
    %v255 = vsub.f32 0.0, %v251
    %v256 = vsub.f32 0.0, %v252
    %v257 = vmul.f32 %v253, 1.442695
    %v258 = vpow.pop %v257
    %v259 = vmul.f32 %v254, 1.442695
    %v260 = vpow.pop %v259
    %v261 = vmul.f32 %v255, 1.442695
    %v262 = vpow.pop %v261
    %v263 = vmul.f32 %v256, 1.442695
    %v264 = vpow.pop %v263
    %v265 = vadd.f32 %v258, 1.0
    %v266 = vadd.f32 %v260, 1.0
    %v267 = vadd.f32 %v262, 1.0
    %v268 = vadd.f32 %v264, 1.0
    %v269 = vrcp.pop %v265
    %v270 = vrcp.pop %v266
    %v271 = vrcp.pop %v267
    %v272 = vrcp.pop %v268
    %273 = vst [vmem:[#allocation7] sm:$0xff] %v269
    %274 = vst [vmem:[#allocation7 + $0x8] sm:$0xff] %v270
    %275 = vst [vmem:[#allocation7 + $0x10] sm:$0xff] %v271
    %276 = vst [vmem:[#allocation7 + $0x18] sm:$0xff] %v272
    // Predicated region
    $region18: #{tpu_custom_call.1} parent=1 // pred_check
      _
    $region19: #{tpu_custom_call.1} parent=1 // pred_check_branch
      %278 = sbr.rel (0) target = $region21
    $region20: #{tpu_custom_call.1} parent=1 // pred_region
      %s280 = ssub.s32 512, 512
      %281 = vsyncadd [#allocation4], %s280
      %s283 = sshll.u32 [#allocation7], 4
      %s284 = int_to_ptr.vmem [resolvable:$true] %s283
      %286 = dma.vmem_to_hbm [thread:$0]  %s284, 512, %s2, [#allocation4]
    $region21: #{tpu_custom_call.1} parent=1 // pred_fallthru
      _
    // Predicated region
    $region22: #{tpu_custom_call.1} parent=1 // pred_check
      _
    $region23: #{tpu_custom_call.1} parent=1 // pred_check_branch
      %288 = sbr.rel (0) target = $region25
    $region24: #{tpu_custom_call.1} parent=1 // pred_region
      %289 = dma.done [#allocation4], 512
    $region25: #{tpu_custom_call.1} parent=1 // pred_fallthru
      _
    %290 = vsyncpa [#allocation3], 1
    %291 = vsyncpa [#allocation4], 1
    %292 = vsyncpa [#allocation5], 1

</llo_original>
